<compile_context>
chip_gen: v5e
topology: v5e:2x2
jax: 0.10.0
libtpu: 0.0.40
codegen_flags: <defaults>
</compile_context>

<pallas_src>
import functools

import jax
import jax.numpy as jnp
from jax import lax
from jax.experimental import pallas as pl
from jax.experimental.pallas import tpu as pltpu

EPS = 1e-3


def _bn_kernel_single(x_ref, gb_ref, o_ref, *, inv_n):
    # x_ref: (CB, L)   gb_ref: (CB, 2) = [gamma | beta]   o_ref: (CB, L)
    x = x_ref[...].astype(jnp.float32)
    mean = jnp.sum(x, axis=-1, keepdims=True) * inv_n           # (CB, 1)
    centered = x - mean
    var = jnp.sum(centered * centered, axis=-1, keepdims=True) * inv_n
    inv_std = lax.rsqrt(var + EPS)
    gamma = gb_ref[:, 0:1]
    beta = gb_ref[:, 1:2]
    o_ref[...] = (centered * (inv_std * gamma) + beta).astype(o_ref.dtype)


def _bn_kernel_batched(x_ref, gb_ref, o_ref, s1_ref, s2_ref, *, inv_count):
    # grid = (C_blocks, pass, N); pass 0 accumulates stats, pass 1 normalizes.
    # x_ref / o_ref: (CB, L) (N dim squeezed)   gb_ref: (CB, 2)
    # s1_ref / s2_ref: (CB, 1) f32 scratch, persistent across grid steps.
    p = pl.program_id(1)
    n = pl.program_id(2)

    x = x_ref[...].astype(jnp.float32)

    @pl.when(jnp.logical_and(p == 0, n == 0))
    def _():
        s1_ref[...] = jnp.zeros_like(s1_ref)
        s2_ref[...] = jnp.zeros_like(s2_ref)

    @pl.when(p == 0)
    def _():
        s1_ref[...] += jnp.sum(x, axis=-1, keepdims=True)
        s2_ref[...] += jnp.sum(x * x, axis=-1, keepdims=True)
        # Placeholder write; this output block is revisited and overwritten in
        # pass 1 (last write wins).
        o_ref[...] = x.astype(o_ref.dtype)

    @pl.when(p == 1)
    def _():
        mean = s1_ref[...] * inv_count
        var = jnp.maximum(s2_ref[...] * inv_count - mean * mean, 0.0)
        inv_std = lax.rsqrt(var + EPS)
        gamma = gb_ref[:, 0:1]
        beta = gb_ref[:, 1:2]
        scale = inv_std * gamma
        shift = beta - mean * scale
        o_ref[...] = (x * scale + shift).astype(o_ref.dtype)


def batchnorm2d_pallas(x_nchw, gamma, beta, block_c=240):
    """x_nchw: (N, C, H, W); gamma, beta: (C,). Training-mode BN forward."""
    N, C, H, W = x_nchw.shape
    L = H * W
    dtype = x_nchw.dtype
    itemsize = jnp.dtype(dtype).itemsize

    # Single (C, 2) parameter slab: one small DMA per grid step instead of two.
    gb = jnp.stack(
        [gamma.astype(jnp.float32), beta.astype(jnp.float32)], axis=-1
    )  # (C, 2)

    cb = min(block_c, C)
    if C % cb != 0:
        cb = C
    n_cblocks = C // cb

    if N == 1:
        # NCHW with N=1 is already (C, H*W)-contiguous: a free view.
        x2d = x_nchw.reshape(C, L)
        out2d = pl.pallas_call(
            functools.partial(_bn_kernel_single, inv_n=1.0 / L),
            out_shape=jax.ShapeDtypeStruct((C, L), dtype),
            grid=(n_cblocks,),
            in_specs=[
                pl.BlockSpec((cb, L), lambda j: (j, 0)),
                pl.BlockSpec((cb, 2), lambda j: (j, 0)),
            ],
            out_specs=pl.BlockSpec((cb, L), lambda j: (j, 0)),
            compiler_params=pltpu.CompilerParams(
                dimension_semantics=("parallel",),
            ),
            cost_estimate=pl.CostEstimate(
                flops=6 * C * L,
                transcendentals=C,
                bytes_accessed=2 * C * L * itemsize + C * 2 * 4,
            ),
        )(x2d, gb)
        return out2d.reshape(N, C, H, W)

    # General N: keep the native (N, C, H*W) layout (no wrapper transposes).
    # Pass 0 accumulates per-channel sums across the batch in VMEM scratch;
    # pass 1 re-reads x and writes the normalized output.  Per-block VMEM is
    # independent of N, so this stays within scoped VMEM on all generations.
    x3d = x_nchw.reshape(N, C, L)
    out3d = pl.pallas_call(
        functools.partial(_bn_kernel_batched, inv_count=1.0 / (N * L)),
        out_shape=jax.ShapeDtypeStruct((N, C, L), dtype),
        grid=(n_cblocks, 2, N),
        in_specs=[
            pl.BlockSpec((pl.Squeezed(), cb, L), lambda j, p, n: (n, j, 0)),
            pl.BlockSpec((cb, 2), lambda j, p, n: (j, 0)),
        ],
        out_specs=pl.BlockSpec((pl.Squeezed(), cb, L), lambda j, p, n: (n, j, 0)),
        scratch_shapes=[
            pltpu.VMEM((cb, 1), jnp.float32),
            pltpu.VMEM((cb, 1), jnp.float32),
        ],
        compiler_params=pltpu.CompilerParams(
            dimension_semantics=("parallel", "arbitrary", "arbitrary"),
        ),
        cost_estimate=pl.CostEstimate(
            flops=8 * N * C * L,
            transcendentals=C,
            bytes_accessed=3 * N * C * L * itemsize + C * 2 * 4,
        ),
    )(x3d, gb)
    return out3d.reshape(N, C, H, W)


def _reference_bn(x, gamma, beta):
    mean = jnp.mean(x, axis=(0, 2, 3), keepdims=True)
    var = jnp.mean((x - mean) ** 2, axis=(0, 2, 3), keepdims=True)
    C = x.shape[1]
    return (x - mean) / jnp.sqrt(var + EPS) * gamma.reshape(1, C, 1, 1) + beta.reshape(
        1, C, 1, 1
    )


if __name__ == "__main__":
    key = jax.random.PRNGKey(0)
    N, C, H, W = 1, 960, 14, 14   # exact shape implied by the PyTorch module
    x = jax.random.normal(key, (N, C, H, W), dtype=jnp.float32)

    # PyTorch BatchNorm2d default init: weight=1, bias=0 (deterministic).
    gamma = jnp.ones((C,), dtype=jnp.float32)
    beta = jnp.zeros((C,), dtype=jnp.float32)

    out = batchnorm2d_pallas(x, gamma, beta)
    out = jax.block_until_ready(out)
    ref = _reference_bn(x, gamma, beta)
    assert out.shape == (N, C, H, W)
    assert jnp.max(jnp.abs(out - ref)) < 1e-4

    # Also exercise the transpose-free general-N path.
    x2 = jax.random.normal(jax.random.PRNGKey(1), (2, C, H, W), dtype=jnp.float32)
    out2 = jax.block_until_ready(batchnorm2d_pallas(x2, gamma, beta))
    ref2 = _reference_bn(x2, gamma, beta)
    assert out2.shape == x2.shape
    assert jnp.max(jnp.abs(out2 - ref2)) < 1e-4

    print("KERNEL_OK")
</pallas_src>

<mosaic_0001>
module attributes {stable_mosaic.version = 11 : i64} {
  func.func @_bn_kernel_single(%arg0: i32, %arg1: memref<240x196xf32, #tpu.memory_space<vmem>>, %arg2: memref<240x2xf32, #tpu.memory_space<vmem>>, %arg3: memref<240x196xf32, #tpu.memory_space<vmem>>) attributes {dimension_semantics = [#tpu.dimension_semantics<parallel>], iteration_bounds = array<i64: 4>, scalar_prefetch = 0 : i64, scratch_operands = 0 : i64, tpu.core_type = #tpu.core_type<tc>, window_params = [{transform_indices = @transform_0, window_bounds = array<i64: 240, 196>}, {transform_indices = @transform_1, window_bounds = array<i64: 240, 2>}, {transform_indices = @transform_2, window_bounds = array<i64: 240, 196>}]} {
    %c0 = arith.constant 0 : index
    %c0_0 = arith.constant 0 : index
    %0 = vector.load %arg1[%c0, %c0_0] : memref<240x196xf32, #tpu.memory_space<vmem>>, vector<240x196xf32>
    %cst = arith.constant dense<0.000000e+00> : vector<240xf32>
    %1 = vector.multi_reduction <add>, %0, %cst [1] : vector<240x196xf32> to vector<240xf32>
    %2 = vector.shape_cast %1 : vector<240xf32> to vector<240x1xf32>
    %cst_1 = arith.constant 0.00510204071 : f32
    %3 = vector.broadcast %cst_1 : f32 to vector<240x1xf32>
    %4 = arith.mulf %2, %3 : vector<240x1xf32>
    %5 = vector.broadcast %4 : vector<240x1xf32> to vector<240x196xf32>
    %6 = arith.subf %0, %5 : vector<240x196xf32>
    %7 = arith.mulf %6, %6 : vector<240x196xf32>
    %cst_2 = arith.constant dense<0.000000e+00> : vector<240xf32>
    %8 = vector.multi_reduction <add>, %7, %cst_2 [1] : vector<240x196xf32> to vector<240xf32>
    %9 = vector.shape_cast %8 : vector<240xf32> to vector<240x1xf32>
    %cst_3 = arith.constant 0.00510204071 : f32
    %10 = vector.broadcast %cst_3 : f32 to vector<240x1xf32>
    %11 = arith.mulf %9, %10 : vector<240x1xf32>
    %cst_4 = arith.constant 1.000000e-03 : f32
    %12 = vector.broadcast %cst_4 : f32 to vector<240x1xf32>
    %13 = arith.addf %11, %12 : vector<240x1xf32>
    %14 = math.rsqrt %13 : vector<240x1xf32>
    %c0_5 = arith.constant 0 : index
    %c0_6 = arith.constant 0 : index
    %15 = vector.load %arg2[%c0_5, %c0_6] : memref<240x2xf32, #tpu.memory_space<vmem>>, vector<240x1xf32>
    %c0_7 = arith.constant 0 : index
    %c1 = arith.constant 1 : index
    %16 = vector.load %arg2[%c0_7, %c1] : memref<240x2xf32, #tpu.memory_space<vmem>>, vector<240x1xf32>
    %17 = arith.mulf %14, %15 : vector<240x1xf32>
    %18 = vector.broadcast %17 : vector<240x1xf32> to vector<240x196xf32>
    %19 = arith.mulf %6, %18 : vector<240x196xf32>
    %20 = vector.broadcast %16 : vector<240x1xf32> to vector<240x196xf32>
    %21 = arith.addf %19, %20 : vector<240x196xf32>
    %c0_8 = arith.constant 0 : index
    %c0_9 = arith.constant 0 : index
    %22 = vector.load %arg3[%c0_8, %c0_9] : memref<240x196xf32, #tpu.memory_space<vmem>>, vector<240x196xf32>
    tpu.vector_store %arg3[%c0_8, %c0_9], %21 {strides = array<i32>} : memref<240x196xf32, #tpu.memory_space<vmem>>, vector<240x196xf32>,
    return
  }
  func.func @transform_0(%arg0: i32) -> (i32, i32) {
    %c0_i32 = arith.constant 0 : i32
    %c0_i32_0 = arith.constant 0 : i32
    return %arg0, %c0_i32 : i32, i32
  }
  func.func @transform_1(%arg0: i32) -> (i32, i32) {
    %c0_i32 = arith.constant 0 : i32
    %c0_i32_0 = arith.constant 0 : i32
    return %arg0, %c0_i32 : i32, i32
  }
  func.func @transform_2(%arg0: i32) -> (i32, i32) {
    %c0_i32 = arith.constant 0 : i32
    %c0_i32_0 = arith.constant 0 : i32
    return %arg0, %c0_i32 : i32, i32
  }
}

</mosaic_0001>

<llo_original>
// kernel: tpu_custom_call.1
$region0: #{tpu_custom_call.1}
  #allocation0 [shape = 'u32[]', space=smem, size = 0x4, offset = 0x4, fixed_abs, tag = 'smem constant byte address 0x4 - core index']
  #allocation1 [shape = 'u32[72,128]{1,0:T(1,128)}', space=vmem, size = 0x9000, scoped, tag = 'internal scratch']
  %s0 = inlined_call_operand.vmem [shape: f32[960,196], index: 0, kind: input, shape index: {}]
  %s1 = inlined_call_operand.vmem [shape: f32[960,2], index: 1, kind: input, shape index: {}]
  %s2 = inlined_call_operand.vmem [shape: f32[960,196], index: 2, kind: output, shape index: {}]
  %s3 = sld [smem:[#allocation0]]
  $region41: #{tpu_custom_call.1} parent=0
    _
  %s5 = ssub.s32 1, %s3
  %s6 = scalar_select 0, %s5, %s3
  loop: start=0, step=1, limit=6
  $region2: #{tpu_custom_call.1} parent=0 // loop_pre_header
    _
  $region3: #{tpu_custom_call.1} parent=0 // loop_header
    %s8 = sphi 0, %s12
    %p9 = scmp.ge.s32.totalorder %s8, 6
    %s18 = sphi 0, %s20
    %s21 = sphi 0, %s18
    %s22 = sphi 0, %s21
    %s38 = sphi 0, %s22
    %s44 = sphi 0, %s46
    %s47 = sphi 0, %s44
    %s48 = sphi 0, %s47
    %s64 = sphi 0, %s48
    %s70 = sphi 0, %s72
    %s73 = sphi 0, %s70
    %s74 = sphi 0, %s73
    %s90 = sphi 0, %s74
  $region4: #{tpu_custom_call.1} parent=0 // loop_header_branch
    %11 = sbr.rel (%p9) target = $region8
  $region5: #{tpu_custom_call.1} parent=0 // loop_body
    %s13 = ssub.s32 %s8, 1
    %s14 = ssub.s32 %s8, 2
    %s15 = sadd.s32 %s8, 1
    %s16 = ssub.s32 %s8, %s15
    %p17 = scmp.eq.s32.totalorder %s16, 0
    %s19 = sadd.s32 %s18, 1
    %s20 = scalar_select %p17, %s18, %s19
    %p23 = pneg %p17
    %p24 = scmp.eq.s32.totalorder %s8, 3
    %p25 = por %p23, %p24
    %p26 = scmp.ne.s32.totalorder %s18, %s21
    %p27 = scmp.eq.s32.totalorder %s8, 0
    %p28 = por %p26, %p27
    %p29 = scmp.ne.s32.totalorder %s18, %s21
    %p30 = scmp.eq.s32.totalorder %s13, 3
    %p31 = por %p29, %p30
    %p32 = scmp.ne.s32.totalorder %s21, %s22
    %p33 = scmp.eq.s32.totalorder %s13, 0
    %p34 = por %p32, %p33
    %p35 = scmp.ne.s32.totalorder %s21, %s22
    %p36 = scmp.eq.s32.totalorder %s14, 3
    %p37 = por %p35, %p36
    %p39 = scmp.ne.s32.totalorder %s22, %s38
    %p40 = scmp.eq.s32.totalorder %s14, 0
    %p41 = por %p39, %p40
    %s42 = ssub.s32 %s8, %s15
    %p43 = scmp.eq.s32.totalorder %s42, 0
    %s45 = sadd.s32 %s44, 1
    %s46 = scalar_select %p43, %s44, %s45
    %p49 = pneg %p43
    %p50 = scmp.eq.s32.totalorder %s8, 3
    %p51 = por %p49, %p50
    %p52 = scmp.ne.s32.totalorder %s44, %s47
    %p53 = scmp.eq.s32.totalorder %s8, 0
    %p54 = por %p52, %p53
    %p55 = scmp.ne.s32.totalorder %s44, %s47
    %p56 = scmp.eq.s32.totalorder %s13, 3
    %p57 = por %p55, %p56
    %p58 = scmp.ne.s32.totalorder %s47, %s48
    %p59 = scmp.eq.s32.totalorder %s13, 0
    %p60 = por %p58, %p59
    %p61 = scmp.ne.s32.totalorder %s47, %s48
    %p62 = scmp.eq.s32.totalorder %s14, 3
    %p63 = por %p61, %p62
    %p65 = scmp.ne.s32.totalorder %s48, %s64
    %p66 = scmp.eq.s32.totalorder %s14, 0
    %p67 = por %p65, %p66
    %s68 = ssub.s32 %s8, %s15
    %p69 = scmp.eq.s32.totalorder %s68, 0
    %s71 = sadd.s32 %s70, 1
    %s72 = scalar_select %p69, %s70, %s71
    %p75 = pneg %p69
    %p76 = scmp.eq.s32.totalorder %s8, 3
    %p77 = por %p75, %p76
    %p78 = scmp.ne.s32.totalorder %s70, %s73
    %p79 = scmp.eq.s32.totalorder %s8, 0
    %p80 = por %p78, %p79
    %p81 = scmp.ne.s32.totalorder %s70, %s73
    %p82 = scmp.eq.s32.totalorder %s13, 3
    %p83 = por %p81, %p82
    %p84 = scmp.ne.s32.totalorder %s73, %s74
    %p85 = scmp.eq.s32.totalorder %s13, 0
    %p86 = por %p84, %p85
    %p87 = scmp.ne.s32.totalorder %s73, %s74
    %p88 = scmp.eq.s32.totalorder %s14, 3
    %p89 = por %p87, %p88
    %p91 = scmp.ne.s32.totalorder %s74, %s90
    %p92 = scmp.eq.s32.totalorder %s14, 0
    %p93 = por %p91, %p92
    %p94 = scmp.le.s32.totalorder 1, %s8
    %p95 = scmp.lt.s32.totalorder %s8, 5
    %p96 = pnand %p94, %p95
    %p97 = pneg %p96
    // Predicated region
    $region9: #{tpu_custom_call.1} parent=5 // pred_check
      _
    $region10: #{tpu_custom_call.1} parent=5 // pred_check_branch
      %99 = sbr.rel (%p96) target = $region12
    $region11: #{tpu_custom_call.1} parent=5 // pred_region
      %s100 = ssub.s32 %s8, 1
    $region12: #{tpu_custom_call.1} parent=5 // pred_fallthru
      _
    %p101 = scmp.lt.s32.totalorder %s8, 4
    // Predicated region
    $region13: #{tpu_custom_call.1} parent=5 // pred_check
      %p102 = pneg %p101
    $region14: #{tpu_custom_call.1} parent=5 // pred_check_branch
      %104 = sbr.rel (%p102) target = $region16
    $region15: #{tpu_custom_call.1} parent=5 // pred_region
      // Predicated region
      $region17: #{tpu_custom_call.1} parent=15 // pred_check
        %p105 = pneg %p28
      $region18: #{tpu_custom_call.1} parent=15 // pred_check_branch
        %107 = sbr.rel (%p105) target = $region20
      $region19: #{tpu_custom_call.1} parent=15 // pred_region
        %s108 = smul.u32 30, %s8
        %p109 = scmp.lt.s32.totalorder %s108, 119
        %s110 = scalar_select %p109, %s108, 119
        %s111 = smul.addr %s110, 2
        %s112 = smul.addr %s111, 8
        %s113 = scalar_lea.vmem %s0, %s112
        %s114 = smul.u32 30, %s8
      $region20: #{tpu_custom_call.1} parent=15 // pred_fallthru
        _
      // Predicated region
      $region21: #{tpu_custom_call.1} parent=15 // pred_check
        %p115 = pneg %p54
      $region22: #{tpu_custom_call.1} parent=15 // pred_check_branch
        %117 = sbr.rel (%p115) target = $region24
      $region23: #{tpu_custom_call.1} parent=15 // pred_region
        %s118 = smul.u32 30, %s8
        %p119 = scmp.lt.s32.totalorder %s118, 119
        %s120 = scalar_select %p119, %s118, 119
        %s121 = smul.addr %s120, 8
        %s122 = scalar_lea.vmem %s1, %s121
        %s123 = smul.u32 30, %s8
      $region24: #{tpu_custom_call.1} parent=15 // pred_fallthru
        _
    $region16: #{tpu_custom_call.1} parent=5 // pred_fallthru
      _
    %p124 = scmp.le.s32.totalorder 1, %s8
    %p125 = scmp.lt.s32.totalorder %s8, 5
    %p126 = pnand %p124, %p125
    %p127 = pneg %p126
    // Predicated region
    $region25: #{tpu_custom_call.1} parent=5 // pred_check
      _
    $region26: #{tpu_custom_call.1} parent=5 // pred_check_branch
      %129 = sbr.rel (%p126) target = $region28
    $region27: #{tpu_custom_call.1} parent=5 // pred_region
      %s130 = ssub.s32 %s8, 1
      %s131 = smul.u32 30, %s13
      %p132 = scmp.lt.s32.totalorder %s131, 119
      %s133 = scalar_select %p132, %s131, 119
      %s134 = smul.addr %s133, 2
      %s135 = smul.addr %s134, 8
      %s136 = scalar_lea.vmem %s0, %s135
      %p137 = pneg %p34
      %p138 = pneg %p31
      %s139 = smul.u32 30, %s13
      %p140 = scmp.lt.s32.totalorder %s139, 119
      %s141 = scalar_select %p140, %s139, 119
      %s142 = smul.addr %s141, 8
      %s143 = scalar_lea.vmem %s1, %s142
      %p144 = pneg %p60
      %p145 = pneg %p57
      %p146 = pneg %p86
      %p147 = pneg %p83
      %s148 = smul.u32 30, %s13
      %p149 = scmp.lt.s32.totalorder %s148, 119
      %s150 = scalar_select %p149, %s148, 119
      %s151 = smul.addr %s150, 2
      %s152 = smul.addr %s151, 8
      %s153 = scalar_lea.vmem %s2, %s152
      %s154 = smul.u32 30, %s13
      %p155 = scmp.lt.s32.totalorder %s154, 119
      %s156 = scalar_select %p155, %s154, 119
      %s157 = smul.addr %s156, 2
      %s158 = smul.addr %s157, 8
      %s159 = scalar_lea.vmem %s0, %s158
      %s160 = smul.u32 30, %s13
      %s161 = smul.u32 30, %s13
      %p162 = scmp.lt.s32.totalorder %s161, 119
      %s163 = scalar_select %p162, %s161, 119
      %s164 = smul.addr %s163, 8
      %s165 = scalar_lea.vmem %s1, %s164
      %s166 = smul.u32 30, %s13
      %s167 = smul.u32 30, %s13
      %p168 = scmp.lt.s32.totalorder %s167, 119
      %s169 = scalar_select %p168, %s167, 119
      %s170 = smul.addr %s169, 2
      %s171 = smul.addr %s170, 8
      %s172 = scalar_lea.vmem %s2, %s171
      %s173 = smul.u32 30, %s13
      %v174 = vld [vmem:[%s159] sm:$0xff]
      %v175 = vld [vmem:[%s159 + $0x8] sm:$0xff]
      %v176 = vld [vmem:[%s159 + $0x10] sm:$0xff]
      %v177 = vld [vmem:[%s159 + $0x18] sm:$0xff]
      %v178 = vld [vmem:[%s159 + $0x20] sm:$0xff]
      %v179 = vld [vmem:[%s159 + $0x28] sm:$0xff]
      %v180 = vld [vmem:[%s159 + $0x30] sm:$0xff]
      %v181 = vld [vmem:[%s159 + $0x38] sm:$0xff]
      %v182 = vld [vmem:[%s159 + $0x40] sm:$0xff]
      %v183 = vld [vmem:[%s159 + $0x48] sm:$0xff]
      %v184 = vld [vmem:[%s159 + $0x50] sm:$0xff]
      %v185 = vld [vmem:[%s159 + $0x58] sm:$0xff]
      %v186 = vld [vmem:[%s159 + $0x60] sm:$0xff]
      %v187 = vld [vmem:[%s159 + $0x68] sm:$0xff]
      %v188 = vld [vmem:[%s159 + $0x70] sm:$0xff]
      %v189 = vld [vmem:[%s159 + $0x78] sm:$0xff]
      %v190 = vld [vmem:[%s159 + $0x80] sm:$0xff]
      %v191 = vld [vmem:[%s159 + $0x88] sm:$0xff]
      %v192 = vld [vmem:[%s159 + $0x90] sm:$0xff]
      %v193 = vld [vmem:[%s159 + $0x98] sm:$0xff]
      %v194 = vld [vmem:[%s159 + $0xa0] sm:$0xff]
      %v195 = vld [vmem:[%s159 + $0xa8] sm:$0xff]
      %v196 = vld [vmem:[%s159 + $0xb0] sm:$0xff]
      %v197 = vld [vmem:[%s159 + $0xb8] sm:$0xff]
      %v198 = vld [vmem:[%s159 + $0xc0] sm:$0xff]
      %v199 = vld [vmem:[%s159 + $0xc8] sm:$0xff]
      %v200 = vld [vmem:[%s159 + $0xd0] sm:$0xff]
      %v201 = vld [vmem:[%s159 + $0xd8] sm:$0xff]
      %v202 = vld [vmem:[%s159 + $0xe0] sm:$0xff]
      %v203 = vld [vmem:[%s159 + $0xe8] sm:$0xff]
      %v204 = vld [vmem:[%s159 + $0xf0] sm:$0xff]
      %v205 = vld [vmem:[%s159 + $0xf8] sm:$0xff]
      %v206 = vld [vmem:[%s159 + $0x100] sm:$0xff]
      %v207 = vld [vmem:[%s159 + $0x108] sm:$0xff]
      %v208 = vld [vmem:[%s159 + $0x110] sm:$0xff]
      %v209 = vld [vmem:[%s159 + $0x118] sm:$0xff]
      %v210 = vld [vmem:[%s159 + $0x120] sm:$0xff]
      %v211 = vld [vmem:[%s159 + $0x128] sm:$0xff]
      %v212 = vld [vmem:[%s159 + $0x130] sm:$0xff]
      %v213 = vld [vmem:[%s159 + $0x138] sm:$0xff]
      %v214 = vld [vmem:[%s159 + $0x140] sm:$0xff]
      %v215 = vld [vmem:[%s159 + $0x148] sm:$0xff]
      %v216 = vld [vmem:[%s159 + $0x150] sm:$0xff]
      %v217 = vld [vmem:[%s159 + $0x158] sm:$0xff]
      %v218 = vld [vmem:[%s159 + $0x160] sm:$0xff]
      %v219 = vld [vmem:[%s159 + $0x168] sm:$0xff]
      %v220 = vld [vmem:[%s159 + $0x170] sm:$0xff]
      %v221 = vld [vmem:[%s159 + $0x178] sm:$0xff]
      %v222 = vld [vmem:[%s159 + $0x180] sm:$0xff]
      %v223 = vld [vmem:[%s159 + $0x188] sm:$0xff]
      %v224 = vld [vmem:[%s159 + $0x190] sm:$0xff]
      %v225 = vld [vmem:[%s159 + $0x198] sm:$0xff]
      %v226 = vld [vmem:[%s159 + $0x1a0] sm:$0xff]
      %v227 = vld [vmem:[%s159 + $0x1a8] sm:$0xff]
      %v228 = vld [vmem:[%s159 + $0x1b0] sm:$0xff]
      %v229 = vld [vmem:[%s159 + $0x1b8] sm:$0xff]
      %v230 = vld [vmem:[%s159 + $0x1c0] sm:$0xff]
      %v231 = vld [vmem:[%s159 + $0x1c8] sm:$0xff]
      %v232 = vld [vmem:[%s159 + $0x1d0] sm:$0xff]
      %v233 = vld [vmem:[%s159 + $0x1d8] sm:$0xff]
      %vm234 = vcmask 556032
      %v235 = vsel %vm234, %v175, 0.0
      %v236 = vadd.f32 %v174, %v235
      %237 = vadd.xlane.f32.xlu0 %v236
      %v238 = vpop.xlane.xlu0 %237
      %v239 = vsel %vm234, %v177, 0.0
      %v240 = vadd.f32 %v176, %v239
      %241 = vadd.xlane.f32.xlu0 %v240
      %v242 = vpop.xlane.xlu0 %241
      %v243 = vsel %vm234, %v179, 0.0
      %v244 = vadd.f32 %v178, %v243
      %245 = vadd.xlane.f32.xlu0 %v244
      %v246 = vpop.xlane.xlu0 %245
      %v247 = vsel %vm234, %v181, 0.0
      %v248 = vadd.f32 %v180, %v247
      %249 = vadd.xlane.f32.xlu0 %v248
      %v250 = vpop.xlane.xlu0 %249
      %v251 = vsel %vm234, %v183, 0.0
      %v252 = vadd.f32 %v182, %v251
      %253 = vadd.xlane.f32.xlu0 %v252
      %v254 = vpop.xlane.xlu0 %253
      %v255 = vsel %vm234, %v185, 0.0
      %v256 = vadd.f32 %v184, %v255
      %257 = vadd.xlane.f32.xlu0 %v256
      %v258 = vpop.xlane.xlu0 %257
      %v259 = vsel %vm234, %v187, 0.0
      %v260 = vadd.f32 %v186, %v259
      %261 = vadd.xlane.f32.xlu0 %v260
      %v262 = vpop.xlane.xlu0 %261
      %v263 = vsel %vm234, %v189, 0.0
      %v264 = vadd.f32 %v188, %v263
      %265 = vadd.xlane.f32.xlu0 %v264
      %v266 = vpop.xlane.xlu0 %265
      %v267 = vsel %vm234, %v191, 0.0
      %v268 = vadd.f32 %v190, %v267
      %269 = vadd.xlane.f32.xlu0 %v268
      %v270 = vpop.xlane.xlu0 %269
      %v271 = vsel %vm234, %v193, 0.0
      %v272 = vadd.f32 %v192, %v271
      %273 = vadd.xlane.f32.xlu0 %v272
      %v274 = vpop.xlane.xlu0 %273
      %v275 = vsel %vm234, %v195, 0.0
      %v276 = vadd.f32 %v194, %v275
      %277 = vadd.xlane.f32.xlu0 %v276
      %v278 = vpop.xlane.xlu0 %277
      %v279 = vsel %vm234, %v197, 0.0
      %v280 = vadd.f32 %v196, %v279
      %281 = vadd.xlane.f32.xlu0 %v280
      %v282 = vpop.xlane.xlu0 %281
      %v283 = vsel %vm234, %v199, 0.0
      %v284 = vadd.f32 %v198, %v283
      %285 = vadd.xlane.f32.xlu0 %v284
      %v286 = vpop.xlane.xlu0 %285
      %v287 = vsel %vm234, %v201, 0.0
      %v288 = vadd.f32 %v200, %v287
      %289 = vadd.xlane.f32.xlu0 %v288
      %v290 = vpop.xlane.xlu0 %289
      %v291 = vsel %vm234, %v203, 0.0
      %v292 = vadd.f32 %v202, %v291
      %293 = vadd.xlane.f32.xlu0 %v292
      %v294 = vpop.xlane.xlu0 %293
      %v295 = vsel %vm234, %v205, 0.0
      %v296 = vadd.f32 %v204, %v295
      %297 = vadd.xlane.f32.xlu0 %v296
      %v298 = vpop.xlane.xlu0 %297
      %v299 = vsel %vm234, %v207, 0.0
      %v300 = vadd.f32 %v206, %v299
      %301 = vadd.xlane.f32.xlu0 %v300
      %v302 = vpop.xlane.xlu0 %301
      %v303 = vsel %vm234, %v209, 0.0
      %v304 = vadd.f32 %v208, %v303
      %305 = vadd.xlane.f32.xlu0 %v304
      %v306 = vpop.xlane.xlu0 %305
      %v307 = vsel %vm234, %v211, 0.0
      %v308 = vadd.f32 %v210, %v307
      %309 = vadd.xlane.f32.xlu0 %v308
      %v310 = vpop.xlane.xlu0 %309
      %v311 = vsel %vm234, %v213, 0.0
      %v312 = vadd.f32 %v212, %v311
      %313 = vadd.xlane.f32.xlu0 %v312
      %v314 = vpop.xlane.xlu0 %313
      %v315 = vsel %vm234, %v215, 0.0
      %v316 = vadd.f32 %v214, %v315
      %317 = vadd.xlane.f32.xlu0 %v316
      %v318 = vpop.xlane.xlu0 %317
      %v319 = vsel %vm234, %v217, 0.0
      %v320 = vadd.f32 %v216, %v319
      %321 = vadd.xlane.f32.xlu0 %v320
      %v322 = vpop.xlane.xlu0 %321
      %v323 = vsel %vm234, %v219, 0.0
      %v324 = vadd.f32 %v218, %v323
      %325 = vadd.xlane.f32.xlu0 %v324
      %v326 = vpop.xlane.xlu0 %325
      %v327 = vsel %vm234, %v221, 0.0
      %v328 = vadd.f32 %v220, %v327
      %329 = vadd.xlane.f32.xlu0 %v328
      %v330 = vpop.xlane.xlu0 %329
      %v331 = vsel %vm234, %v223, 0.0
      %v332 = vadd.f32 %v222, %v331
      %333 = vadd.xlane.f32.xlu0 %v332
      %v334 = vpop.xlane.xlu0 %333
      %v335 = vsel %vm234, %v225, 0.0
      %v336 = vadd.f32 %v224, %v335
      %337 = vadd.xlane.f32.xlu0 %v336
      %v338 = vpop.xlane.xlu0 %337
      %v339 = vsel %vm234, %v227, 0.0
      %v340 = vadd.f32 %v226, %v339
      %341 = vadd.xlane.f32.xlu0 %v340
      %v342 = vpop.xlane.xlu0 %341
      %v343 = vsel %vm234, %v229, 0.0
      %v344 = vadd.f32 %v228, %v343
      %345 = vadd.xlane.f32.xlu0 %v344
      %v346 = vpop.xlane.xlu0 %345
      %v347 = vsel %vm234, %v231, 0.0
      %v348 = vadd.f32 %v230, %v347
      %349 = vadd.xlane.f32.xlu0 %v348
      %v350 = vpop.xlane.xlu0 %349
      %v351 = vsel %vm234, %v233, 0.0
      %v352 = vadd.f32 %v232, %v351
      %353 = vadd.xlane.f32.xlu0 %v352
      %v354 = vpop.xlane.xlu0 %353
      %v355 = vmul.f32 %v238, 0.0051020407
      %v356 = vmul.f32 %v242, 0.0051020407
      %v357 = vmul.f32 %v246, 0.0051020407
      %v358 = vmul.f32 %v250, 0.0051020407
      %v359 = vmul.f32 %v254, 0.0051020407
      %v360 = vmul.f32 %v258, 0.0051020407
      %v361 = vmul.f32 %v262, 0.0051020407
      %v362 = vmul.f32 %v266, 0.0051020407
      %v363 = vmul.f32 %v270, 0.0051020407
      %v364 = vmul.f32 %v274, 0.0051020407
      %v365 = vmul.f32 %v278, 0.0051020407
      %v366 = vmul.f32 %v282, 0.0051020407
      %v367 = vmul.f32 %v286, 0.0051020407
      %v368 = vmul.f32 %v290, 0.0051020407
      %v369 = vmul.f32 %v294, 0.0051020407
      %v370 = vmul.f32 %v298, 0.0051020407
      %v371 = vmul.f32 %v302, 0.0051020407
      %v372 = vmul.f32 %v306, 0.0051020407
      %v373 = vmul.f32 %v310, 0.0051020407
      %v374 = vmul.f32 %v314, 0.0051020407
      %v375 = vmul.f32 %v318, 0.0051020407
      %v376 = vmul.f32 %v322, 0.0051020407
      %v377 = vmul.f32 %v326, 0.0051020407
      %v378 = vmul.f32 %v330, 0.0051020407
      %v379 = vmul.f32 %v334, 0.0051020407
      %v380 = vmul.f32 %v338, 0.0051020407
      %v381 = vmul.f32 %v342, 0.0051020407
      %v382 = vmul.f32 %v346, 0.0051020407
      %v383 = vmul.f32 %v350, 0.0051020407
      %v384 = vmul.f32 %v354, 0.0051020407
      %v385 = vsub.f32 %v174, %v355
      %v386 = vsub.f32 %v175, %v355
      %v387 = vsub.f32 %v176, %v356
      %v388 = vsub.f32 %v177, %v356
      %v389 = vsub.f32 %v178, %v357
      %v390 = vsub.f32 %v179, %v357
      %v391 = vsub.f32 %v180, %v358
      %v392 = vsub.f32 %v181, %v358
      %v393 = vsub.f32 %v182, %v359
      %v394 = vsub.f32 %v183, %v359
      %v395 = vsub.f32 %v184, %v360
      %v396 = vsub.f32 %v185, %v360
      %v397 = vsub.f32 %v186, %v361
      %v398 = vsub.f32 %v187, %v361
      %v399 = vsub.f32 %v188, %v362
      %v400 = vsub.f32 %v189, %v362
      %v401 = vsub.f32 %v190, %v363
      %v402 = vsub.f32 %v191, %v363
      %v403 = vsub.f32 %v192, %v364
      %v404 = vsub.f32 %v193, %v364
      %v405 = vsub.f32 %v194, %v365
      %v406 = vsub.f32 %v195, %v365
      %v407 = vsub.f32 %v196, %v366
      %v408 = vsub.f32 %v197, %v366
      %v409 = vsub.f32 %v198, %v367
      %v410 = vsub.f32 %v199, %v367
      %v411 = vsub.f32 %v200, %v368
      %v412 = vsub.f32 %v201, %v368
      %v413 = vsub.f32 %v202, %v369
      %v414 = vsub.f32 %v203, %v369
      %v415 = vsub.f32 %v204, %v370
      %v416 = vsub.f32 %v205, %v370
      %v417 = vsub.f32 %v206, %v371
      %v418 = vsub.f32 %v207, %v371
      %v419 = vsub.f32 %v208, %v372
      %v420 = vsub.f32 %v209, %v372
      %v421 = vsub.f32 %v210, %v373
      %v422 = vsub.f32 %v211, %v373
      %v423 = vsub.f32 %v212, %v374
      %v424 = vsub.f32 %v213, %v374
      %v425 = vsub.f32 %v214, %v375
      %v426 = vsub.f32 %v215, %v375
      %v427 = vsub.f32 %v216, %v376
      %v428 = vsub.f32 %v217, %v376
      %v429 = vsub.f32 %v218, %v377
      %v430 = vsub.f32 %v219, %v377
      %v431 = vsub.f32 %v220, %v378
      %v432 = vsub.f32 %v221, %v378
      %v433 = vsub.f32 %v222, %v379
      %v434 = vsub.f32 %v223, %v379
      %v435 = vsub.f32 %v224, %v380
      %v436 = vsub.f32 %v225, %v380
      %v437 = vsub.f32 %v226, %v381
      %v438 = vsub.f32 %v227, %v381
      %v439 = vsub.f32 %v228, %v382
      %v440 = vsub.f32 %v229, %v382
      %v441 = vsub.f32 %v230, %v383
      %v442 = vsub.f32 %v231, %v383
      %v443 = vsub.f32 %v232, %v384
      %v444 = vsub.f32 %v233, %v384
      %v445 = vmul.f32 %v385, %v385
      %v446 = vmul.f32 %v386, %v386
      %v447 = vmul.f32 %v387, %v387
      %v448 = vmul.f32 %v388, %v388
      %v449 = vmul.f32 %v389, %v389
      %v450 = vmul.f32 %v390, %v390
      %v451 = vmul.f32 %v391, %v391
      %v452 = vmul.f32 %v392, %v392
      %v453 = vmul.f32 %v393, %v393
      %v454 = vmul.f32 %v394, %v394
      %v455 = vmul.f32 %v395, %v395
      %v456 = vmul.f32 %v396, %v396
      %v457 = vmul.f32 %v397, %v397
      %v458 = vmul.f32 %v398, %v398
      %v459 = vmul.f32 %v399, %v399
      %v460 = vmul.f32 %v400, %v400
      %v461 = vmul.f32 %v401, %v401
      %v462 = vmul.f32 %v402, %v402
      %v463 = vmul.f32 %v403, %v403
      %v464 = vmul.f32 %v404, %v404
      %v465 = vmul.f32 %v405, %v405
      %v466 = vmul.f32 %v406, %v406
      %v467 = vmul.f32 %v407, %v407
      %v468 = vmul.f32 %v408, %v408
      %v469 = vmul.f32 %v409, %v409
      %v470 = vmul.f32 %v410, %v410
      %v471 = vmul.f32 %v411, %v411
      %v472 = vmul.f32 %v412, %v412
      %v473 = vmul.f32 %v413, %v413
      %v474 = vmul.f32 %v414, %v414
      %v475 = vmul.f32 %v415, %v415
      %v476 = vmul.f32 %v416, %v416
      %v477 = vmul.f32 %v417, %v417
      %v478 = vmul.f32 %v418, %v418
      %v479 = vmul.f32 %v419, %v419
      %v480 = vmul.f32 %v420, %v420
      %v481 = vmul.f32 %v421, %v421
      %v482 = vmul.f32 %v422, %v422
      %v483 = vmul.f32 %v423, %v423
      %v484 = vmul.f32 %v424, %v424
      %v485 = vmul.f32 %v425, %v425
      %v486 = vmul.f32 %v426, %v426
      %v487 = vmul.f32 %v427, %v427
      %v488 = vmul.f32 %v428, %v428
      %v489 = vmul.f32 %v429, %v429
      %v490 = vmul.f32 %v430, %v430
      %v491 = vmul.f32 %v431, %v431
      %v492 = vmul.f32 %v432, %v432
      %v493 = vmul.f32 %v433, %v433
      %v494 = vmul.f32 %v434, %v434
      %v495 = vmul.f32 %v435, %v435
      %v496 = vmul.f32 %v436, %v436
      %v497 = vmul.f32 %v437, %v437
      %v498 = vmul.f32 %v438, %v438
      %v499 = vmul.f32 %v439, %v439
      %v500 = vmul.f32 %v440, %v440
      %v501 = vmul.f32 %v441, %v441
      %v502 = vmul.f32 %v442, %v442
      %v503 = vmul.f32 %v443, %v443
      %v504 = vmul.f32 %v444, %v444
      %v505 = vsel %vm234, %v446, 0.0
      %v506 = vadd.f32 %v445, %v505
      %507 = vadd.xlane.f32.xlu0 %v506
      %v508 = vpop.xlane.xlu0 %507
      %v509 = vsel %vm234, %v448, 0.0
      %v510 = vadd.f32 %v447, %v509
      %511 = vadd.xlane.f32.xlu0 %v510
      %v512 = vpop.xlane.xlu0 %511
      %v513 = vsel %vm234, %v450, 0.0
      %v514 = vadd.f32 %v449, %v513
      %515 = vadd.xlane.f32.xlu0 %v514
      %v516 = vpop.xlane.xlu0 %515
      %v517 = vsel %vm234, %v452, 0.0
      %v518 = vadd.f32 %v451, %v517
      %519 = vadd.xlane.f32.xlu0 %v518
      %v520 = vpop.xlane.xlu0 %519
      %v521 = vsel %vm234, %v454, 0.0
      %v522 = vadd.f32 %v453, %v521
      %523 = vadd.xlane.f32.xlu0 %v522
      %v524 = vpop.xlane.xlu0 %523
      %v525 = vsel %vm234, %v456, 0.0
      %v526 = vadd.f32 %v455, %v525
      %527 = vadd.xlane.f32.xlu0 %v526
      %v528 = vpop.xlane.xlu0 %527
      %v529 = vsel %vm234, %v458, 0.0
      %v530 = vadd.f32 %v457, %v529
      %531 = vadd.xlane.f32.xlu0 %v530
      %v532 = vpop.xlane.xlu0 %531
      %v533 = vsel %vm234, %v460, 0.0
      %v534 = vadd.f32 %v459, %v533
      %535 = vadd.xlane.f32.xlu0 %v534
      %v536 = vpop.xlane.xlu0 %535
      %v537 = vsel %vm234, %v462, 0.0
      %v538 = vadd.f32 %v461, %v537
      %539 = vadd.xlane.f32.xlu0 %v538
      %v540 = vpop.xlane.xlu0 %539
      %v541 = vsel %vm234, %v464, 0.0
      %v542 = vadd.f32 %v463, %v541
      %543 = vadd.xlane.f32.xlu0 %v542
      %v544 = vpop.xlane.xlu0 %543
      %v545 = vsel %vm234, %v466, 0.0
      %v546 = vadd.f32 %v465, %v545
      %547 = vadd.xlane.f32.xlu0 %v546
      %v548 = vpop.xlane.xlu0 %547
      %v549 = vsel %vm234, %v468, 0.0
      %v550 = vadd.f32 %v467, %v549
      %551 = vadd.xlane.f32.xlu0 %v550
      %v552 = vpop.xlane.xlu0 %551
      %v553 = vsel %vm234, %v470, 0.0
      %v554 = vadd.f32 %v469, %v553
      %555 = vadd.xlane.f32.xlu0 %v554
      %v556 = vpop.xlane.xlu0 %555
      %v557 = vsel %vm234, %v472, 0.0
      %v558 = vadd.f32 %v471, %v557
      %559 = vadd.xlane.f32.xlu0 %v558
      %v560 = vpop.xlane.xlu0 %559
      %v561 = vsel %vm234, %v474, 0.0
      %v562 = vadd.f32 %v473, %v561
      %563 = vadd.xlane.f32.xlu0 %v562
      %v564 = vpop.xlane.xlu0 %563
      %v565 = vsel %vm234, %v476, 0.0
      %v566 = vadd.f32 %v475, %v565
      %567 = vadd.xlane.f32.xlu0 %v566
      %v568 = vpop.xlane.xlu0 %567
      %v569 = vsel %vm234, %v478, 0.0
      %v570 = vadd.f32 %v477, %v569
      %571 = vadd.xlane.f32.xlu0 %v570
      %v572 = vpop.xlane.xlu0 %571
      %v573 = vsel %vm234, %v480, 0.0
      %v574 = vadd.f32 %v479, %v573
      %575 = vadd.xlane.f32.xlu0 %v574
      %v576 = vpop.xlane.xlu0 %575
      %v577 = vsel %vm234, %v482, 0.0
      %v578 = vadd.f32 %v481, %v577
      %579 = vadd.xlane.f32.xlu0 %v578
      %v580 = vpop.xlane.xlu0 %579
      %v581 = vsel %vm234, %v484, 0.0
      %v582 = vadd.f32 %v483, %v581
      %583 = vadd.xlane.f32.xlu0 %v582
      %v584 = vpop.xlane.xlu0 %583
      %v585 = vsel %vm234, %v486, 0.0
      %v586 = vadd.f32 %v485, %v585
      %587 = vadd.xlane.f32.xlu0 %v586
      %v588 = vpop.xlane.xlu0 %587
      %v589 = vsel %vm234, %v488, 0.0
      %v590 = vadd.f32 %v487, %v589
      %591 = vadd.xlane.f32.xlu0 %v590
      %v592 = vpop.xlane.xlu0 %591
      %v593 = vsel %vm234, %v490, 0.0
      %v594 = vadd.f32 %v489, %v593
      %595 = vadd.xlane.f32.xlu0 %v594
      %v596 = vpop.xlane.xlu0 %595
      %v597 = vsel %vm234, %v492, 0.0
      %v598 = vadd.f32 %v491, %v597
      %599 = vadd.xlane.f32.xlu0 %v598
      %v600 = vpop.xlane.xlu0 %599
      %v601 = vsel %vm234, %v494, 0.0
      %v602 = vadd.f32 %v493, %v601
      %603 = vadd.xlane.f32.xlu0 %v602
      %v604 = vpop.xlane.xlu0 %603
      %v605 = vsel %vm234, %v496, 0.0
      %v606 = vadd.f32 %v495, %v605
      %607 = vadd.xlane.f32.xlu0 %v606
      %v608 = vpop.xlane.xlu0 %607
      %v609 = vsel %vm234, %v498, 0.0
      %v610 = vadd.f32 %v497, %v609
      %611 = vadd.xlane.f32.xlu0 %v610
      %v612 = vpop.xlane.xlu0 %611
      %v613 = vsel %vm234, %v500, 0.0
      %v614 = vadd.f32 %v499, %v613
      %615 = vadd.xlane.f32.xlu0 %v614
      %v616 = vpop.xlane.xlu0 %615
      %v617 = vsel %vm234, %v502, 0.0
      %v618 = vadd.f32 %v501, %v617
      %619 = vadd.xlane.f32.xlu0 %v618
      %v620 = vpop.xlane.xlu0 %619
      %v621 = vsel %vm234, %v504, 0.0
      %v622 = vadd.f32 %v503, %v621
      %623 = vadd.xlane.f32.xlu0 %v622
      %v624 = vpop.xlane.xlu0 %623
      %v625 = vmul.f32 %v508, 0.0051020407
      %v626 = vmul.f32 %v512, 0.0051020407
      %v627 = vmul.f32 %v516, 0.0051020407
      %v628 = vmul.f32 %v520, 0.0051020407
      %v629 = vmul.f32 %v524, 0.0051020407
      %v630 = vmul.f32 %v528, 0.0051020407
      %v631 = vmul.f32 %v532, 0.0051020407
      %v632 = vmul.f32 %v536, 0.0051020407
      %v633 = vmul.f32 %v540, 0.0051020407
      %v634 = vmul.f32 %v544, 0.0051020407
      %v635 = vmul.f32 %v548, 0.0051020407
      %v636 = vmul.f32 %v552, 0.0051020407
      %v637 = vmul.f32 %v556, 0.0051020407
      %v638 = vmul.f32 %v560, 0.0051020407
      %v639 = vmul.f32 %v564, 0.0051020407
      %v640 = vmul.f32 %v568, 0.0051020407
      %v641 = vmul.f32 %v572, 0.0051020407
      %v642 = vmul.f32 %v576, 0.0051020407
      %v643 = vmul.f32 %v580, 0.0051020407
      %v644 = vmul.f32 %v584, 0.0051020407
      %v645 = vmul.f32 %v588, 0.0051020407
      %v646 = vmul.f32 %v592, 0.0051020407
      %v647 = vmul.f32 %v596, 0.0051020407
      %v648 = vmul.f32 %v600, 0.0051020407
      %v649 = vmul.f32 %v604, 0.0051020407
      %v650 = vmul.f32 %v608, 0.0051020407
      %v651 = vmul.f32 %v612, 0.0051020407
      %v652 = vmul.f32 %v616, 0.0051020407
      %v653 = vmul.f32 %v620, 0.0051020407
      %v654 = vmul.f32 %v624, 0.0051020407
      %v655 = vadd.f32 %v625, 0.001
      %v656 = vadd.f32 %v626, 0.001
      %v657 = vadd.f32 %v627, 0.001
      %v658 = vadd.f32 %v628, 0.001
      %v659 = vadd.f32 %v629, 0.001
      %v660 = vadd.f32 %v630, 0.001
      %v661 = vadd.f32 %v631, 0.001
      %v662 = vadd.f32 %v632, 0.001
      %v663 = vadd.f32 %v633, 0.001
      %v664 = vadd.f32 %v634, 0.001
      %v665 = vadd.f32 %v635, 0.001
      %v666 = vadd.f32 %v636, 0.001
      %v667 = vadd.f32 %v637, 0.001
      %v668 = vadd.f32 %v638, 0.001
      %v669 = vadd.f32 %v639, 0.001
      %v670 = vadd.f32 %v640, 0.001
      %v671 = vadd.f32 %v641, 0.001
      %v672 = vadd.f32 %v642, 0.001
      %v673 = vadd.f32 %v643, 0.001
      %v674 = vadd.f32 %v644, 0.001
      %v675 = vadd.f32 %v645, 0.001
      %v676 = vadd.f32 %v646, 0.001
      %v677 = vadd.f32 %v647, 0.001
      %v678 = vadd.f32 %v648, 0.001
      %v679 = vadd.f32 %v649, 0.001
      %v680 = vadd.f32 %v650, 0.001
      %v681 = vadd.f32 %v651, 0.001
      %v682 = vadd.f32 %v652, 0.001
      %v683 = vadd.f32 %v653, 0.001
      %v684 = vadd.f32 %v654, 0.001
      %v685 = vrsqrt.pop %v655
      %v686 = vmul.f32 %v685, %v655
      %v687 = vmul.f32 %v686, %v685
      %v688 = vmul.f32 0.5, %v687
      %v689 = vsub.f32 1.5, %v688
      %v690 = vmul.f32 %v685, %v689
      %vm691 = vweird.f32 %v655
      %vm692 = vweird.f32 %v685
      %vm693 = vmor %vm691, %vm692
      %v694 = vsel %vm693, %v685, %v690
      %v695 = vrsqrt.pop %v656
      %v696 = vmul.f32 %v695, %v656
      %v697 = vmul.f32 %v696, %v695
      %v698 = vmul.f32 0.5, %v697
      %v699 = vsub.f32 1.5, %v698
      %v700 = vmul.f32 %v695, %v699
      %vm701 = vweird.f32 %v656
      %vm702 = vweird.f32 %v695
      %vm703 = vmor %vm701, %vm702
      %v704 = vsel %vm703, %v695, %v700
      %v705 = vrsqrt.pop %v657
      %v706 = vmul.f32 %v705, %v657
      %v707 = vmul.f32 %v706, %v705
      %v708 = vmul.f32 0.5, %v707
      %v709 = vsub.f32 1.5, %v708
      %v710 = vmul.f32 %v705, %v709
      %vm711 = vweird.f32 %v657
      %vm712 = vweird.f32 %v705
      %vm713 = vmor %vm711, %vm712
      %v714 = vsel %vm713, %v705, %v710
      %v715 = vrsqrt.pop %v658
      %v716 = vmul.f32 %v715, %v658
      %v717 = vmul.f32 %v716, %v715
      %v718 = vmul.f32 0.5, %v717
      %v719 = vsub.f32 1.5, %v718
      %v720 = vmul.f32 %v715, %v719
      %vm721 = vweird.f32 %v658
      %vm722 = vweird.f32 %v715
      %vm723 = vmor %vm721, %vm722
      %v724 = vsel %vm723, %v715, %v720
      %v725 = vrsqrt.pop %v659
      %v726 = vmul.f32 %v725, %v659
      %v727 = vmul.f32 %v726, %v725
      %v728 = vmul.f32 0.5, %v727
      %v729 = vsub.f32 1.5, %v728
      %v730 = vmul.f32 %v725, %v729
      %vm731 = vweird.f32 %v659
      %vm732 = vweird.f32 %v725
      %vm733 = vmor %vm731, %vm732
      %v734 = vsel %vm733, %v725, %v730
      %v735 = vrsqrt.pop %v660
      %v736 = vmul.f32 %v735, %v660
      %v737 = vmul.f32 %v736, %v735
      %v738 = vmul.f32 0.5, %v737
      %v739 = vsub.f32 1.5, %v738
      %v740 = vmul.f32 %v735, %v739
      %vm741 = vweird.f32 %v660
      %vm742 = vweird.f32 %v735
      %vm743 = vmor %vm741, %vm742
      %v744 = vsel %vm743, %v735, %v740
      %v745 = vrsqrt.pop %v661
      %v746 = vmul.f32 %v745, %v661
      %v747 = vmul.f32 %v746, %v745
      %v748 = vmul.f32 0.5, %v747
      %v749 = vsub.f32 1.5, %v748
      %v750 = vmul.f32 %v745, %v749
      %vm751 = vweird.f32 %v661
      %vm752 = vweird.f32 %v745
      %vm753 = vmor %vm751, %vm752
      %v754 = vsel %vm753, %v745, %v750
      %v755 = vrsqrt.pop %v662
      %v756 = vmul.f32 %v755, %v662
      %v757 = vmul.f32 %v756, %v755
      %v758 = vmul.f32 0.5, %v757
      %v759 = vsub.f32 1.5, %v758
      %v760 = vmul.f32 %v755, %v759
      %vm761 = vweird.f32 %v662
      %vm762 = vweird.f32 %v755
      %vm763 = vmor %vm761, %vm762
      %v764 = vsel %vm763, %v755, %v760
      %v765 = vrsqrt.pop %v663
      %v766 = vmul.f32 %v765, %v663
      %v767 = vmul.f32 %v766, %v765
      %v768 = vmul.f32 0.5, %v767
      %v769 = vsub.f32 1.5, %v768
      %v770 = vmul.f32 %v765, %v769
      %vm771 = vweird.f32 %v663
      %vm772 = vweird.f32 %v765
      %vm773 = vmor %vm771, %vm772
      %v774 = vsel %vm773, %v765, %v770
      %v775 = vrsqrt.pop %v664
      %v776 = vmul.f32 %v775, %v664
      %v777 = vmul.f32 %v776, %v775
      %v778 = vmul.f32 0.5, %v777
      %v779 = vsub.f32 1.5, %v778
      %v780 = vmul.f32 %v775, %v779
      %vm781 = vweird.f32 %v664
      %vm782 = vweird.f32 %v775
      %vm783 = vmor %vm781, %vm782
      %v784 = vsel %vm783, %v775, %v780
      %v785 = vrsqrt.pop %v665
      %v786 = vmul.f32 %v785, %v665
      %v787 = vmul.f32 %v786, %v785
      %v788 = vmul.f32 0.5, %v787
      %v789 = vsub.f32 1.5, %v788
      %v790 = vmul.f32 %v785, %v789
      %vm791 = vweird.f32 %v665
      %vm792 = vweird.f32 %v785
      %vm793 = vmor %vm791, %vm792
      %v794 = vsel %vm793, %v785, %v790
      %v795 = vrsqrt.pop %v666
      %v796 = vmul.f32 %v795, %v666
      %v797 = vmul.f32 %v796, %v795
      %v798 = vmul.f32 0.5, %v797
      %v799 = vsub.f32 1.5, %v798
      %v800 = vmul.f32 %v795, %v799
      %vm801 = vweird.f32 %v666
      %vm802 = vweird.f32 %v795
      %vm803 = vmor %vm801, %vm802
      %v804 = vsel %vm803, %v795, %v800
      %v805 = vrsqrt.pop %v667
      %v806 = vmul.f32 %v805, %v667
      %v807 = vmul.f32 %v806, %v805
      %v808 = vmul.f32 0.5, %v807
      %v809 = vsub.f32 1.5, %v808
      %v810 = vmul.f32 %v805, %v809
      %vm811 = vweird.f32 %v667
      %vm812 = vweird.f32 %v805
      %vm813 = vmor %vm811, %vm812
      %v814 = vsel %vm813, %v805, %v810
      %v815 = vrsqrt.pop %v668
      %v816 = vmul.f32 %v815, %v668
      %v817 = vmul.f32 %v816, %v815
      %v818 = vmul.f32 0.5, %v817
      %v819 = vsub.f32 1.5, %v818
      %v820 = vmul.f32 %v815, %v819
      %vm821 = vweird.f32 %v668
      %vm822 = vweird.f32 %v815
      %vm823 = vmor %vm821, %vm822
      %v824 = vsel %vm823, %v815, %v820
      %v825 = vrsqrt.pop %v669
      %v826 = vmul.f32 %v825, %v669
      %v827 = vmul.f32 %v826, %v825
      %v828 = vmul.f32 0.5, %v827
      %v829 = vsub.f32 1.5, %v828
      %v830 = vmul.f32 %v825, %v829
      %vm831 = vweird.f32 %v669
      %vm832 = vweird.f32 %v825
      %vm833 = vmor %vm831, %vm832
      %v834 = vsel %vm833, %v825, %v830
      %v835 = vrsqrt.pop %v670
      %v836 = vmul.f32 %v835, %v670
      %v837 = vmul.f32 %v836, %v835
      %v838 = vmul.f32 0.5, %v837
      %v839 = vsub.f32 1.5, %v838
      %v840 = vmul.f32 %v835, %v839
      %vm841 = vweird.f32 %v670
      %vm842 = vweird.f32 %v835
      %vm843 = vmor %vm841, %vm842
      %v844 = vsel %vm843, %v835, %v840
      %v845 = vrsqrt.pop %v671
      %v846 = vmul.f32 %v845, %v671
      %v847 = vmul.f32 %v846, %v845
      %v848 = vmul.f32 0.5, %v847
      %v849 = vsub.f32 1.5, %v848
      %v850 = vmul.f32 %v845, %v849
      %vm851 = vweird.f32 %v671
      %vm852 = vweird.f32 %v845
      %vm853 = vmor %vm851, %vm852
      %v854 = vsel %vm853, %v845, %v850
      %v855 = vrsqrt.pop %v672
      %v856 = vmul.f32 %v855, %v672
      %v857 = vmul.f32 %v856, %v855
      %v858 = vmul.f32 0.5, %v857
      %v859 = vsub.f32 1.5, %v858
      %v860 = vmul.f32 %v855, %v859
      %vm861 = vweird.f32 %v672
      %vm862 = vweird.f32 %v855
      %vm863 = vmor %vm861, %vm862
      %v864 = vsel %vm863, %v855, %v860
      %v865 = vrsqrt.pop %v673
      %v866 = vmul.f32 %v865, %v673
      %v867 = vmul.f32 %v866, %v865
      %v868 = vmul.f32 0.5, %v867
      %v869 = vsub.f32 1.5, %v868
      %v870 = vmul.f32 %v865, %v869
      %vm871 = vweird.f32 %v673
      %vm872 = vweird.f32 %v865
      %vm873 = vmor %vm871, %vm872
      %v874 = vsel %vm873, %v865, %v870
      %v875 = vrsqrt.pop %v674
      %v876 = vmul.f32 %v875, %v674
      %v877 = vmul.f32 %v876, %v875
      %v878 = vmul.f32 0.5, %v877
      %v879 = vsub.f32 1.5, %v878
      %v880 = vmul.f32 %v875, %v879
      %vm881 = vweird.f32 %v674
      %vm882 = vweird.f32 %v875
      %vm883 = vmor %vm881, %vm882
      %v884 = vsel %vm883, %v875, %v880
      %v885 = vrsqrt.pop %v675
      %v886 = vmul.f32 %v885, %v675
      %v887 = vmul.f32 %v886, %v885
      %v888 = vmul.f32 0.5, %v887
      %v889 = vsub.f32 1.5, %v888
      %v890 = vmul.f32 %v885, %v889
      %vm891 = vweird.f32 %v675
      %vm892 = vweird.f32 %v885
      %vm893 = vmor %vm891, %vm892
      %v894 = vsel %vm893, %v885, %v890
      %v895 = vrsqrt.pop %v676
      %v896 = vmul.f32 %v895, %v676
      %v897 = vmul.f32 %v896, %v895
      %v898 = vmul.f32 0.5, %v897
      %v899 = vsub.f32 1.5, %v898
      %v900 = vmul.f32 %v895, %v899
      %vm901 = vweird.f32 %v676
      %vm902 = vweird.f32 %v895
      %vm903 = vmor %vm901, %vm902
      %v904 = vsel %vm903, %v895, %v900
      %v905 = vrsqrt.pop %v677
      %v906 = vmul.f32 %v905, %v677
      %v907 = vmul.f32 %v906, %v905
      %v908 = vmul.f32 0.5, %v907
      %v909 = vsub.f32 1.5, %v908
      %v910 = vmul.f32 %v905, %v909
      %vm911 = vweird.f32 %v677
      %vm912 = vweird.f32 %v905
      %vm913 = vmor %vm911, %vm912
      %v914 = vsel %vm913, %v905, %v910
      %v915 = vrsqrt.pop %v678
      %v916 = vmul.f32 %v915, %v678
      %v917 = vmul.f32 %v916, %v915
      %v918 = vmul.f32 0.5, %v917
      %v919 = vsub.f32 1.5, %v918
      %v920 = vmul.f32 %v915, %v919
      %vm921 = vweird.f32 %v678
      %vm922 = vweird.f32 %v915
      %vm923 = vmor %vm921, %vm922
      %v924 = vsel %vm923, %v915, %v920
      %v925 = vrsqrt.pop %v679
      %v926 = vmul.f32 %v925, %v679
      %v927 = vmul.f32 %v926, %v925
      %v928 = vmul.f32 0.5, %v927
      %v929 = vsub.f32 1.5, %v928
      %v930 = vmul.f32 %v925, %v929
      %vm931 = vweird.f32 %v679
      %vm932 = vweird.f32 %v925
      %vm933 = vmor %vm931, %vm932
      %v934 = vsel %vm933, %v925, %v930
      %v935 = vrsqrt.pop %v680
      %v936 = vmul.f32 %v935, %v680
      %v937 = vmul.f32 %v936, %v935
      %v938 = vmul.f32 0.5, %v937
      %v939 = vsub.f32 1.5, %v938
      %v940 = vmul.f32 %v935, %v939
      %vm941 = vweird.f32 %v680
      %vm942 = vweird.f32 %v935
      %vm943 = vmor %vm941, %vm942
      %v944 = vsel %vm943, %v935, %v940
      %v945 = vrsqrt.pop %v681
      %v946 = vmul.f32 %v945, %v681
      %v947 = vmul.f32 %v946, %v945
      %v948 = vmul.f32 0.5, %v947
      %v949 = vsub.f32 1.5, %v948
      %v950 = vmul.f32 %v945, %v949
      %vm951 = vweird.f32 %v681
      %vm952 = vweird.f32 %v945
      %vm953 = vmor %vm951, %vm952
      %v954 = vsel %vm953, %v945, %v950
      %v955 = vrsqrt.pop %v682
      %v956 = vmul.f32 %v955, %v682
      %v957 = vmul.f32 %v956, %v955
      %v958 = vmul.f32 0.5, %v957
      %v959 = vsub.f32 1.5, %v958
      %v960 = vmul.f32 %v955, %v959
      %vm961 = vweird.f32 %v682
      %vm962 = vweird.f32 %v955
      %vm963 = vmor %vm961, %vm962
      %v964 = vsel %vm963, %v955, %v960
      %v965 = vrsqrt.pop %v683
      %v966 = vmul.f32 %v965, %v683
      %v967 = vmul.f32 %v966, %v965
      %v968 = vmul.f32 0.5, %v967
      %v969 = vsub.f32 1.5, %v968
      %v970 = vmul.f32 %v965, %v969
      %vm971 = vweird.f32 %v683
      %vm972 = vweird.f32 %v965
      %vm973 = vmor %vm971, %vm972
      %v974 = vsel %vm973, %v965, %v970
      %v975 = vrsqrt.pop %v684
      %v976 = vmul.f32 %v975, %v684
      %v977 = vmul.f32 %v976, %v975
      %v978 = vmul.f32 0.5, %v977
      %v979 = vsub.f32 1.5, %v978
      %v980 = vmul.f32 %v975, %v979
      %vm981 = vweird.f32 %v684
      %vm982 = vweird.f32 %v975
      %vm983 = vmor %vm981, %vm982
      %v984 = vsel %vm983, %v975, %v980
      %v985 = vld [vmem:[%s165] sm:$0xff]
      %v986 = vld [vmem:[%s165 + $0x8] sm:$0xff]
      %v987 = vld [vmem:[%s165 + $0x10] sm:$0xff]
      %v988 = vld [vmem:[%s165 + $0x18] sm:$0xff]
      %v989 = vld [vmem:[%s165 + $0x20] sm:$0xff]
      %v990 = vld [vmem:[%s165 + $0x28] sm:$0xff]
      %v991 = vld [vmem:[%s165 + $0x30] sm:$0xff]
      %v992 = vld [vmem:[%s165 + $0x38] sm:$0xff]
      %v993 = vld [vmem:[%s165 + $0x40] sm:$0xff]
      %v994 = vld [vmem:[%s165 + $0x48] sm:$0xff]
      %v995 = vld [vmem:[%s165 + $0x50] sm:$0xff]
      %v996 = vld [vmem:[%s165 + $0x58] sm:$0xff]
      %v997 = vld [vmem:[%s165 + $0x60] sm:$0xff]
      %v998 = vld [vmem:[%s165 + $0x68] sm:$0xff]
      %v999 = vld [vmem:[%s165 + $0x70] sm:$0xff]
      %v1000 = vld [vmem:[%s165 + $0x78] sm:$0xff]
      %v1001 = vld [vmem:[%s165 + $0x80] sm:$0xff]
      %v1002 = vld [vmem:[%s165 + $0x88] sm:$0xff]
      %v1003 = vld [vmem:[%s165 + $0x90] sm:$0xff]
      %v1004 = vld [vmem:[%s165 + $0x98] sm:$0xff]
      %v1005 = vld [vmem:[%s165 + $0xa0] sm:$0xff]
      %v1006 = vld [vmem:[%s165 + $0xa8] sm:$0xff]
      %v1007 = vld [vmem:[%s165 + $0xb0] sm:$0xff]
      %v1008 = vld [vmem:[%s165 + $0xb8] sm:$0xff]
      %v1009 = vld [vmem:[%s165 + $0xc0] sm:$0xff]
      %v1010 = vld [vmem:[%s165 + $0xc8] sm:$0xff]
      %v1011 = vld [vmem:[%s165 + $0xd0] sm:$0xff]
      %v1012 = vld [vmem:[%s165 + $0xd8] sm:$0xff]
      %v1013 = vld [vmem:[%s165 + $0xe0] sm:$0xff]
      %v1014 = vld [vmem:[%s165 + $0xe8] sm:$0xff]
      %v1015 = vmul.f32 %v694, %v985
      %v1016 = vmul.f32 %v704, %v986
      %v1017 = vmul.f32 %v714, %v987
      %v1018 = vmul.f32 %v724, %v988
      %v1019 = vmul.f32 %v734, %v989
      %v1020 = vmul.f32 %v744, %v990
      %v1021 = vmul.f32 %v754, %v991
      %v1022 = vmul.f32 %v764, %v992
      %v1023 = vmul.f32 %v774, %v993
      %v1024 = vmul.f32 %v784, %v994
      %v1025 = vmul.f32 %v794, %v995
      %v1026 = vmul.f32 %v804, %v996
      %v1027 = vmul.f32 %v814, %v997
      %v1028 = vmul.f32 %v824, %v998
      %v1029 = vmul.f32 %v834, %v999
      %v1030 = vmul.f32 %v844, %v1000
      %v1031 = vmul.f32 %v854, %v1001
      %v1032 = vmul.f32 %v864, %v1002
      %v1033 = vmul.f32 %v874, %v1003
      %v1034 = vmul.f32 %v884, %v1004
      %v1035 = vmul.f32 %v894, %v1005
      %v1036 = vmul.f32 %v904, %v1006
      %v1037 = vmul.f32 %v914, %v1007
      %v1038 = vmul.f32 %v924, %v1008
      %v1039 = vmul.f32 %v934, %v1009
      %v1040 = vmul.f32 %v944, %v1010
      %v1041 = vmul.f32 %v954, %v1011
      %v1042 = vmul.f32 %v964, %v1012
      %v1043 = vmul.f32 %v974, %v1013
      %v1044 = vmul.f32 %v984, %v1014
      %1046 = vset.pattern.permute.xlu0 0
      %1047 = vperm.xlu0 %1046, %v1015
      %v1048 = vpop.permute.xlu0 %1047
      %1051 = vset.pattern.permute.xlu0 0
      %1052 = vperm.xlu0 %1051, %v1016
      %v1053 = vpop.permute.xlu0 %1052
      %1056 = vset.pattern.permute.xlu0 0
      %1057 = vperm.xlu0 %1056, %v1017
      %v1058 = vpop.permute.xlu0 %1057
      %1061 = vset.pattern.permute.xlu0 0
      %1062 = vperm.xlu0 %1061, %v1018
      %v1063 = vpop.permute.xlu0 %1062
      %1066 = vset.pattern.permute.xlu0 0
      %1067 = vperm.xlu0 %1066, %v1019
      %v1068 = vpop.permute.xlu0 %1067
      %1071 = vset.pattern.permute.xlu0 0
      %1072 = vperm.xlu0 %1071, %v1020
      %v1073 = vpop.permute.xlu0 %1072
      %1076 = vset.pattern.permute.xlu0 0
      %1077 = vperm.xlu0 %1076, %v1021
      %v1078 = vpop.permute.xlu0 %1077
      %1081 = vset.pattern.permute.xlu0 0
      %1082 = vperm.xlu0 %1081, %v1022
      %v1083 = vpop.permute.xlu0 %1082
      %1086 = vset.pattern.permute.xlu0 0
      %1087 = vperm.xlu0 %1086, %v1023
      %v1088 = vpop.permute.xlu0 %1087
      %1091 = vset.pattern.permute.xlu0 0
      %1092 = vperm.xlu0 %1091, %v1024
      %v1093 = vpop.permute.xlu0 %1092
      %1096 = vset.pattern.permute.xlu0 0
      %1097 = vperm.xlu0 %1096, %v1025
      %v1098 = vpop.permute.xlu0 %1097
      %1101 = vset.pattern.permute.xlu0 0
      %1102 = vperm.xlu0 %1101, %v1026
      %v1103 = vpop.permute.xlu0 %1102
      %1106 = vset.pattern.permute.xlu0 0
      %1107 = vperm.xlu0 %1106, %v1027
      %v1108 = vpop.permute.xlu0 %1107
      %1111 = vset.pattern.permute.xlu0 0
      %1112 = vperm.xlu0 %1111, %v1028
      %v1113 = vpop.permute.xlu0 %1112
      %1116 = vset.pattern.permute.xlu0 0
      %1117 = vperm.xlu0 %1116, %v1029
      %v1118 = vpop.permute.xlu0 %1117
      %1121 = vset.pattern.permute.xlu0 0
      %1122 = vperm.xlu0 %1121, %v1030
      %v1123 = vpop.permute.xlu0 %1122
      %1126 = vset.pattern.permute.xlu0 0
      %1127 = vperm.xlu0 %1126, %v1031
      %v1128 = vpop.permute.xlu0 %1127
      %1131 = vset.pattern.permute.xlu0 0
      %1132 = vperm.xlu0 %1131, %v1032
      %v1133 = vpop.permute.xlu0 %1132
      %1136 = vset.pattern.permute.xlu0 0
      %1137 = vperm.xlu0 %1136, %v1033
      %v1138 = vpop.permute.xlu0 %1137
      %1141 = vset.pattern.permute.xlu0 0
      %1142 = vperm.xlu0 %1141, %v1034
      %v1143 = vpop.permute.xlu0 %1142
      %1146 = vset.pattern.permute.xlu0 0
      %1147 = vperm.xlu0 %1146, %v1035
      %v1148 = vpop.permute.xlu0 %1147
      %1151 = vset.pattern.permute.xlu0 0
      %1152 = vperm.xlu0 %1151, %v1036
      %v1153 = vpop.permute.xlu0 %1152
      %1156 = vset.pattern.permute.xlu0 0
      %1157 = vperm.xlu0 %1156, %v1037
      %v1158 = vpop.permute.xlu0 %1157
      %1161 = vset.pattern.permute.xlu0 0
      %1162 = vperm.xlu0 %1161, %v1038
      %v1163 = vpop.permute.xlu0 %1162
      %1166 = vset.pattern.permute.xlu0 0
      %1167 = vperm.xlu0 %1166, %v1039
      %v1168 = vpop.permute.xlu0 %1167
      %1171 = vset.pattern.permute.xlu0 0
      %1172 = vperm.xlu0 %1171, %v1040
      %v1173 = vpop.permute.xlu0 %1172
      %1176 = vset.pattern.permute.xlu0 0
      %1177 = vperm.xlu0 %1176, %v1041
      %v1178 = vpop.permute.xlu0 %1177
      %1181 = vset.pattern.permute.xlu0 0
      %1182 = vperm.xlu0 %1181, %v1042
      %v1183 = vpop.permute.xlu0 %1182
      %1186 = vset.pattern.permute.xlu0 0
      %1187 = vperm.xlu0 %1186, %v1043
      %v1188 = vpop.permute.xlu0 %1187
      %1191 = vset.pattern.permute.xlu0 0
      %1192 = vperm.xlu0 %1191, %v1044
      %v1193 = vpop.permute.xlu0 %1192
      %v1195 = vmul.f32 %v385, %v1048
      %v1196 = vmul.f32 %v386, %v1048
      %v1197 = vmul.f32 %v387, %v1053
      %v1198 = vmul.f32 %v388, %v1053
      %v1199 = vmul.f32 %v389, %v1058
      %v1200 = vmul.f32 %v390, %v1058
      %v1201 = vmul.f32 %v391, %v1063
      %v1202 = vmul.f32 %v392, %v1063
      %v1203 = vmul.f32 %v393, %v1068
      %v1204 = vmul.f32 %v394, %v1068
      %v1205 = vmul.f32 %v395, %v1073
      %v1206 = vmul.f32 %v396, %v1073
      %v1207 = vmul.f32 %v397, %v1078
      %v1208 = vmul.f32 %v398, %v1078
      %v1209 = vmul.f32 %v399, %v1083
      %v1210 = vmul.f32 %v400, %v1083
      %v1211 = vmul.f32 %v401, %v1088
      %v1212 = vmul.f32 %v402, %v1088
      %v1213 = vmul.f32 %v403, %v1093
      %v1214 = vmul.f32 %v404, %v1093
      %v1215 = vmul.f32 %v405, %v1098
      %v1216 = vmul.f32 %v406, %v1098
      %v1217 = vmul.f32 %v407, %v1103
      %v1218 = vmul.f32 %v408, %v1103
      %v1219 = vmul.f32 %v409, %v1108
      %v1220 = vmul.f32 %v410, %v1108
      %v1221 = vmul.f32 %v411, %v1113
      %v1222 = vmul.f32 %v412, %v1113
      %v1223 = vmul.f32 %v413, %v1118
      %v1224 = vmul.f32 %v414, %v1118
      %v1225 = vmul.f32 %v415, %v1123
      %v1226 = vmul.f32 %v416, %v1123
      %v1227 = vmul.f32 %v417, %v1128
      %v1228 = vmul.f32 %v418, %v1128
      %v1229 = vmul.f32 %v419, %v1133
      %v1230 = vmul.f32 %v420, %v1133
      %v1231 = vmul.f32 %v421, %v1138
      %v1232 = vmul.f32 %v422, %v1138
      %v1233 = vmul.f32 %v423, %v1143
      %v1234 = vmul.f32 %v424, %v1143
      %v1235 = vmul.f32 %v425, %v1148
      %v1236 = vmul.f32 %v426, %v1148
      %v1237 = vmul.f32 %v427, %v1153
      %v1238 = vmul.f32 %v428, %v1153
      %v1239 = vmul.f32 %v429, %v1158
      %v1240 = vmul.f32 %v430, %v1158
      %v1241 = vmul.f32 %v431, %v1163
      %v1242 = vmul.f32 %v432, %v1163
      %v1243 = vmul.f32 %v433, %v1168
      %v1244 = vmul.f32 %v434, %v1168
      %v1245 = vmul.f32 %v435, %v1173
      %v1246 = vmul.f32 %v436, %v1173
      %v1247 = vmul.f32 %v437, %v1178
      %v1248 = vmul.f32 %v438, %v1178
      %v1249 = vmul.f32 %v439, %v1183
      %v1250 = vmul.f32 %v440, %v1183
      %v1251 = vmul.f32 %v441, %v1188
      %v1252 = vmul.f32 %v442, %v1188
      %v1253 = vmul.f32 %v443, %v1193
      %v1254 = vmul.f32 %v444, %v1193
      %1256 = vset.pattern.permute.xlu0 1
      %1257 = vperm.xlu0 %1256, %v985
      %v1258 = vpop.permute.xlu0 %1257
      %1261 = vset.pattern.permute.xlu0 1
      %1262 = vperm.xlu0 %1261, %v986
      %v1263 = vpop.permute.xlu0 %1262
      %1266 = vset.pattern.permute.xlu0 1
      %1267 = vperm.xlu0 %1266, %v987
      %v1268 = vpop.permute.xlu0 %1267
      %1271 = vset.pattern.permute.xlu0 1
      %1272 = vperm.xlu0 %1271, %v988
      %v1273 = vpop.permute.xlu0 %1272
      %1276 = vset.pattern.permute.xlu0 1
      %1277 = vperm.xlu0 %1276, %v989
      %v1278 = vpop.permute.xlu0 %1277
      %1281 = vset.pattern.permute.xlu0 1
      %1282 = vperm.xlu0 %1281, %v990
      %v1283 = vpop.permute.xlu0 %1282
      %1286 = vset.pattern.permute.xlu0 1
      %1287 = vperm.xlu0 %1286, %v991
      %v1288 = vpop.permute.xlu0 %1287
      %1291 = vset.pattern.permute.xlu0 1
      %1292 = vperm.xlu0 %1291, %v992
      %v1293 = vpop.permute.xlu0 %1292
      %1296 = vset.pattern.permute.xlu0 1
      %1297 = vperm.xlu0 %1296, %v993
      %v1298 = vpop.permute.xlu0 %1297
      %1301 = vset.pattern.permute.xlu0 1
      %1302 = vperm.xlu0 %1301, %v994
      %v1303 = vpop.permute.xlu0 %1302
      %1306 = vset.pattern.permute.xlu0 1
      %1307 = vperm.xlu0 %1306, %v995
      %v1308 = vpop.permute.xlu0 %1307
      %1311 = vset.pattern.permute.xlu0 1
      %1312 = vperm.xlu0 %1311, %v996
      %v1313 = vpop.permute.xlu0 %1312
      %1316 = vset.pattern.permute.xlu0 1
      %1317 = vperm.xlu0 %1316, %v997
      %v1318 = vpop.permute.xlu0 %1317
      %1321 = vset.pattern.permute.xlu0 1
      %1322 = vperm.xlu0 %1321, %v998
      %v1323 = vpop.permute.xlu0 %1322
      %1326 = vset.pattern.permute.xlu0 1
      %1327 = vperm.xlu0 %1326, %v999
      %v1328 = vpop.permute.xlu0 %1327
      %1331 = vset.pattern.permute.xlu0 1
      %1332 = vperm.xlu0 %1331, %v1000
      %v1333 = vpop.permute.xlu0 %1332
      %1336 = vset.pattern.permute.xlu0 1
      %1337 = vperm.xlu0 %1336, %v1001
      %v1338 = vpop.permute.xlu0 %1337
      %1341 = vset.pattern.permute.xlu0 1
      %1342 = vperm.xlu0 %1341, %v1002
      %v1343 = vpop.permute.xlu0 %1342
      %1346 = vset.pattern.permute.xlu0 1
      %1347 = vperm.xlu0 %1346, %v1003
      %v1348 = vpop.permute.xlu0 %1347
      %1351 = vset.pattern.permute.xlu0 1
      %1352 = vperm.xlu0 %1351, %v1004
      %v1353 = vpop.permute.xlu0 %1352
      %1356 = vset.pattern.permute.xlu0 1
      %1357 = vperm.xlu0 %1356, %v1005
      %v1358 = vpop.permute.xlu0 %1357
      %1361 = vset.pattern.permute.xlu0 1
      %1362 = vperm.xlu0 %1361, %v1006
      %v1363 = vpop.permute.xlu0 %1362
      %1366 = vset.pattern.permute.xlu0 1
      %1367 = vperm.xlu0 %1366, %v1007
      %v1368 = vpop.permute.xlu0 %1367
      %1371 = vset.pattern.permute.xlu0 1
      %1372 = vperm.xlu0 %1371, %v1008
      %v1373 = vpop.permute.xlu0 %1372
      %1376 = vset.pattern.permute.xlu0 1
      %1377 = vperm.xlu0 %1376, %v1009
      %v1378 = vpop.permute.xlu0 %1377
      %1381 = vset.pattern.permute.xlu0 1
      %1382 = vperm.xlu0 %1381, %v1010
      %v1383 = vpop.permute.xlu0 %1382
      %1386 = vset.pattern.permute.xlu0 1
      %1387 = vperm.xlu0 %1386, %v1011
      %v1388 = vpop.permute.xlu0 %1387
      %1391 = vset.pattern.permute.xlu0 1
      %1392 = vperm.xlu0 %1391, %v1012
      %v1393 = vpop.permute.xlu0 %1392
      %1396 = vset.pattern.permute.xlu0 1
      %1397 = vperm.xlu0 %1396, %v1013
      %v1398 = vpop.permute.xlu0 %1397
      %1401 = vset.pattern.permute.xlu0 1
      %1402 = vperm.xlu0 %1401, %v1014
      %v1403 = vpop.permute.xlu0 %1402
      %v1405 = vadd.f32 %v1195, %v1258
      %v1406 = vadd.f32 %v1196, %v1258
      %v1407 = vadd.f32 %v1197, %v1263
      %v1408 = vadd.f32 %v1198, %v1263
      %v1409 = vadd.f32 %v1199, %v1268
      %v1410 = vadd.f32 %v1200, %v1268
      %v1411 = vadd.f32 %v1201, %v1273
      %v1412 = vadd.f32 %v1202, %v1273
      %v1413 = vadd.f32 %v1203, %v1278
      %v1414 = vadd.f32 %v1204, %v1278
      %v1415 = vadd.f32 %v1205, %v1283
      %v1416 = vadd.f32 %v1206, %v1283
      %v1417 = vadd.f32 %v1207, %v1288
      %v1418 = vadd.f32 %v1208, %v1288
      %v1419 = vadd.f32 %v1209, %v1293
      %v1420 = vadd.f32 %v1210, %v1293
      %v1421 = vadd.f32 %v1211, %v1298
      %v1422 = vadd.f32 %v1212, %v1298
      %v1423 = vadd.f32 %v1213, %v1303
      %v1424 = vadd.f32 %v1214, %v1303
      %v1425 = vadd.f32 %v1215, %v1308
      %v1426 = vadd.f32 %v1216, %v1308
      %v1427 = vadd.f32 %v1217, %v1313
      %v1428 = vadd.f32 %v1218, %v1313
      %v1429 = vadd.f32 %v1219, %v1318
      %v1430 = vadd.f32 %v1220, %v1318
      %v1431 = vadd.f32 %v1221, %v1323
      %v1432 = vadd.f32 %v1222, %v1323
      %v1433 = vadd.f32 %v1223, %v1328
      %v1434 = vadd.f32 %v1224, %v1328
      %v1435 = vadd.f32 %v1225, %v1333
      %v1436 = vadd.f32 %v1226, %v1333
      %v1437 = vadd.f32 %v1227, %v1338
      %v1438 = vadd.f32 %v1228, %v1338
      %v1439 = vadd.f32 %v1229, %v1343
      %v1440 = vadd.f32 %v1230, %v1343
      %v1441 = vadd.f32 %v1231, %v1348
      %v1442 = vadd.f32 %v1232, %v1348
      %v1443 = vadd.f32 %v1233, %v1353
      %v1444 = vadd.f32 %v1234, %v1353
      %v1445 = vadd.f32 %v1235, %v1358
      %v1446 = vadd.f32 %v1236, %v1358
      %v1447 = vadd.f32 %v1237, %v1363
      %v1448 = vadd.f32 %v1238, %v1363
      %v1449 = vadd.f32 %v1239, %v1368
      %v1450 = vadd.f32 %v1240, %v1368
      %v1451 = vadd.f32 %v1241, %v1373
      %v1452 = vadd.f32 %v1242, %v1373
      %v1453 = vadd.f32 %v1243, %v1378
      %v1454 = vadd.f32 %v1244, %v1378
      %v1455 = vadd.f32 %v1245, %v1383
      %v1456 = vadd.f32 %v1246, %v1383
      %v1457 = vadd.f32 %v1247, %v1388
      %v1458 = vadd.f32 %v1248, %v1388
      %v1459 = vadd.f32 %v1249, %v1393
      %v1460 = vadd.f32 %v1250, %v1393
      %v1461 = vadd.f32 %v1251, %v1398
      %v1462 = vadd.f32 %v1252, %v1398
      %v1463 = vadd.f32 %v1253, %v1403
      %v1464 = vadd.f32 %v1254, %v1403
      %1465 = vst [vmem:[%s172] sm:$0xff] %v1405
      %1466 = vst.msk [vmem:[%s172 + $0x8] sm:$0xff] %vm234, %v1406
      %1467 = vst [vmem:[%s172 + $0x10] sm:$0xff] %v1407
      %1468 = vst.msk [vmem:[%s172 + $0x18] sm:$0xff] %vm234, %v1408
      %1469 = vst [vmem:[%s172 + $0x20] sm:$0xff] %v1409
      %1470 = vst.msk [vmem:[%s172 + $0x28] sm:$0xff] %vm234, %v1410
      %1471 = vst [vmem:[%s172 + $0x30] sm:$0xff] %v1411
      %1472 = vst.msk [vmem:[%s172 + $0x38] sm:$0xff] %vm234, %v1412
      %1473 = vst [vmem:[%s172 + $0x40] sm:$0xff] %v1413
      %1474 = vst.msk [vmem:[%s172 + $0x48] sm:$0xff] %vm234, %v1414
      %1475 = vst [vmem:[%s172 + $0x50] sm:$0xff] %v1415
      %1476 = vst.msk [vmem:[%s172 + $0x58] sm:$0xff] %vm234, %v1416
      %1477 = vst [vmem:[%s172 + $0x60] sm:$0xff] %v1417
      %1478 = vst.msk [vmem:[%s172 + $0x68] sm:$0xff] %vm234, %v1418
      %1479 = vst [vmem:[%s172 + $0x70] sm:$0xff] %v1419
      %1480 = vst.msk [vmem:[%s172 + $0x78] sm:$0xff] %vm234, %v1420
      %1481 = vst [vmem:[%s172 + $0x80] sm:$0xff] %v1421
      %1482 = vst.msk [vmem:[%s172 + $0x88] sm:$0xff] %vm234, %v1422
      %1483 = vst [vmem:[%s172 + $0x90] sm:$0xff] %v1423
      %1484 = vst.msk [vmem:[%s172 + $0x98] sm:$0xff] %vm234, %v1424
      %1485 = vst [vmem:[%s172 + $0xa0] sm:$0xff] %v1425
      %1486 = vst.msk [vmem:[%s172 + $0xa8] sm:$0xff] %vm234, %v1426
      %1487 = vst [vmem:[%s172 + $0xb0] sm:$0xff] %v1427
      %1488 = vst.msk [vmem:[%s172 + $0xb8] sm:$0xff] %vm234, %v1428
      %1489 = vst [vmem:[%s172 + $0xc0] sm:$0xff] %v1429
      %1490 = vst.msk [vmem:[%s172 + $0xc8] sm:$0xff] %vm234, %v1430
      %1491 = vst [vmem:[%s172 + $0xd0] sm:$0xff] %v1431
      %1492 = vst.msk [vmem:[%s172 + $0xd8] sm:$0xff] %vm234, %v1432
      %1493 = vst [vmem:[%s172 + $0xe0] sm:$0xff] %v1433
      %1494 = vst.msk [vmem:[%s172 + $0xe8] sm:$0xff] %vm234, %v1434
      %1495 = vst [vmem:[%s172 + $0xf0] sm:$0xff] %v1435
      %1496 = vst.msk [vmem:[%s172 + $0xf8] sm:$0xff] %vm234, %v1436
      %1497 = vst [vmem:[%s172 + $0x100] sm:$0xff] %v1437
      %1498 = vst.msk [vmem:[%s172 + $0x108] sm:$0xff] %vm234, %v1438
      %1499 = vst [vmem:[%s172 + $0x110] sm:$0xff] %v1439
      %1500 = vst.msk [vmem:[%s172 + $0x118] sm:$0xff] %vm234, %v1440
      %1501 = vst [vmem:[%s172 + $0x120] sm:$0xff] %v1441
      %1502 = vst.msk [vmem:[%s172 + $0x128] sm:$0xff] %vm234, %v1442
      %1503 = vst [vmem:[%s172 + $0x130] sm:$0xff] %v1443
      %1504 = vst.msk [vmem:[%s172 + $0x138] sm:$0xff] %vm234, %v1444
      %1505 = vst [vmem:[%s172 + $0x140] sm:$0xff] %v1445
      %1506 = vst.msk [vmem:[%s172 + $0x148] sm:$0xff] %vm234, %v1446
      %1507 = vst [vmem:[%s172 + $0x150] sm:$0xff] %v1447
      %1508 = vst.msk [vmem:[%s172 + $0x158] sm:$0xff] %vm234, %v1448
      %1509 = vst [vmem:[%s172 + $0x160] sm:$0xff] %v1449
      %1510 = vst.msk [vmem:[%s172 + $0x168] sm:$0xff] %vm234, %v1450
      %1511 = vst [vmem:[%s172 + $0x170] sm:$0xff] %v1451
      %1512 = vst.msk [vmem:[%s172 + $0x178] sm:$0xff] %vm234, %v1452
      %1513 = vst [vmem:[%s172 + $0x180] sm:$0xff] %v1453
      %1514 = vst.msk [vmem:[%s172 + $0x188] sm:$0xff] %vm234, %v1454
      %1515 = vst [vmem:[%s172 + $0x190] sm:$0xff] %v1455
      %1516 = vst.msk [vmem:[%s172 + $0x198] sm:$0xff] %vm234, %v1456
      %1517 = vst [vmem:[%s172 + $0x1a0] sm:$0xff] %v1457
      %1518 = vst.msk [vmem:[%s172 + $0x1a8] sm:$0xff] %vm234, %v1458
      %1519 = vst [vmem:[%s172 + $0x1b0] sm:$0xff] %v1459
      %1520 = vst.msk [vmem:[%s172 + $0x1b8] sm:$0xff] %vm234, %v1460
      %1521 = vst [vmem:[%s172 + $0x1c0] sm:$0xff] %v1461
      %1522 = vst.msk [vmem:[%s172 + $0x1c8] sm:$0xff] %vm234, %v1462
      %1523 = vst [vmem:[%s172 + $0x1d0] sm:$0xff] %v1463
      %1524 = vst.msk [vmem:[%s172 + $0x1d8] sm:$0xff] %vm234, %v1464
      %s1525 = smul.u32 30, %s13
      %p1526 = scmp.lt.s32.totalorder %s1525, 119
      %s1527 = scalar_select %p1526, %s1525, 119
      %s1528 = smul.addr %s1527, 2
      %s1529 = smul.addr %s1528, 8
      %s1530 = scalar_lea.vmem %s2, %s1529
      // Predicated region
      $region29: #{tpu_custom_call.1} parent=27 // pred_check
        %p1531 = pneg %p83
      $region30: #{tpu_custom_call.1} parent=27 // pred_check_branch
        %1533 = sbr.rel (%p1531) target = $region32
      $region31: #{tpu_custom_call.1} parent=27 // pred_region
        %s1534 = smul.u32 30, %s13
      $region32: #{tpu_custom_call.1} parent=27 // pred_fallthru
        _
    $region28: #{tpu_custom_call.1} parent=5 // pred_fallthru
      _
    %p1535 = scmp.le.s32.totalorder 2, %s8
    // Predicated region
    $region33: #{tpu_custom_call.1} parent=5 // pred_check
      %p1536 = pneg %p1535
    $region34: #{tpu_custom_call.1} parent=5 // pred_check_branch
      %1538 = sbr.rel (%p1536) target = $region36
    $region35: #{tpu_custom_call.1} parent=5 // pred_region
      %s1539 = ssub.s32 %s8, 2
      // Predicated region
      $region37: #{tpu_custom_call.1} parent=35 // pred_check
        %p1540 = pneg %p89
      $region38: #{tpu_custom_call.1} parent=35 // pred_check_branch
        %1542 = sbr.rel (%p1540) target = $region40
      $region39: #{tpu_custom_call.1} parent=35 // pred_region
        %s1543 = smul.u32 30, %s14
        %p1544 = scmp.lt.s32.totalorder %s1543, 119
        %s1545 = scalar_select %p1544, %s1543, 119
        %s1546 = smul.addr %s1545, 2
        %s1547 = smul.addr %s1546, 8
        %s1548 = scalar_lea.vmem %s2, %s1547
      $region40: #{tpu_custom_call.1} parent=35 // pred_fallthru
        _
    $region36: #{tpu_custom_call.1} parent=5 // pred_fallthru
      _
  $region6: #{tpu_custom_call.1} parent=0 // loop_footer
    %s12 = sadd.s32 1, %s8
  $region7: #{tpu_custom_call.1} parent=0 // loop_footer_branch
    %7 = sbr.rel target = $region3
  $region8: #{tpu_custom_call.1} parent=0 // loop_exit
    _

</llo_original>
